<compile_context>
chip_gen: v6e
topology: v6e:2x2x1
jax: 0.10.0
libtpu: 0.0.40
codegen_flags: <defaults>
</compile_context>

<pallas_src>
import jax
import jax.numpy as jnp
from jax.experimental import pallas as pl
from jax.experimental.pallas import tpu as pltpu

IN_F = 358
IN_PAD = 384          # 3 * 128, lane-aligned K for the first matmul
H1 = 512
H2 = 256
OUT_F = 128
MAX_TB = 1024         # batch tile cap (rows per grid step), multiple of 16


def _round_up(n, m):
    return ((n + m - 1) // m) * m


def ann_kernel(x_ref, w1_ref, b1_ref, w2_ref, b2_ref, w3_ref, b3_ref, o_ref):
    # hidden layer 1 + ReLU   (bf16 x bf16 -> f32 accumulate)
    h1 = jnp.dot(x_ref[...], w1_ref[...], preferred_element_type=jnp.float32)
    h1 = jnp.maximum(h1 + b1_ref[...], 0.0)
    # hidden layer 2 + ReLU
    h2 = jnp.dot(h1.astype(jnp.bfloat16), w2_ref[...],
                 preferred_element_type=jnp.float32)
    h2 = jnp.maximum(h2 + b2_ref[...], 0.0)
    # output layer (no activation)
    out = jnp.dot(h2.astype(jnp.bfloat16), w3_ref[...],
                  preferred_element_type=jnp.float32)
    o_ref[...] = (out + b3_ref[...]).astype(o_ref.dtype)


def prepare_params(w1, b1, w2, b2, w3, b3):
    """One-time (model-init) conversion of parameters into kernel-ready form.

    w*: [in, out] float arrays, b*: [1, out] float arrays.
    Returns a tuple usable by `ann_forward`.
    """
    # Zero-pad w1 rows 358 -> 384; padded rows meet padded zero columns of x.
    w1_p = jnp.pad(w1.astype(jnp.bfloat16), ((0, IN_PAD - IN_F), (0, 0)))
    w2_b = w2.astype(jnp.bfloat16)
    w3_b = w3.astype(jnp.bfloat16)
    b1_f = b1.reshape(1, H1).astype(jnp.float32)
    b2_f = b2.reshape(1, H2).astype(jnp.float32)
    b3_f = b3.reshape(1, OUT_F).astype(jnp.float32)
    return (w1_p, b1_f, w2_b, b2_f, w3_b, b3_f)


def ann_forward(x, params):
    """x: [B, 358] float32 -> [B, 128] float32. `params` from prepare_params."""
    w1_p, b1_f, w2_b, b2_f, w3_b, b3_f = params
    B = x.shape[0]

    # Batch tile: multiple of 16, aim for >= 2 grid steps (v7x dual-TC),
    # capped at MAX_TB. Pad B up so every grid step sees a full block.
    b16 = _round_up(max(B, 1), 16)
    tb = min(MAX_TB, max(16, _round_up(pl.cdiv(b16, 2), 16)))
    B_pad = _round_up(b16, tb)
    nb = B_pad // tb

    # Single fused pad+cast: rows B -> B_pad, columns 358 -> 384 (zeros).
    x_p = jnp.pad(x.astype(jnp.bfloat16),
                  ((0, B_pad - B), (0, IN_PAD - IN_F)))

    resident = lambda shape: pl.BlockSpec(shape, lambda i: (0, 0))

    out = pl.pallas_call(
        ann_kernel,
        out_shape=jax.ShapeDtypeStruct((B_pad, OUT_F), jnp.float32),
        grid=(nb,),
        in_specs=[
            pl.BlockSpec((tb, IN_PAD), lambda i: (i, 0)),   # x tile
            resident((IN_PAD, H1)),                          # w1
            resident((1, H1)),                               # b1
            resident((H1, H2)),                              # w2
            resident((1, H2)),                               # b2
            resident((H2, OUT_F)),                           # w3
            resident((1, OUT_F)),                            # b3
        ],
        out_specs=pl.BlockSpec((tb, OUT_F), lambda i: (i, 0)),
        compiler_params=pltpu.CompilerParams(
            dimension_semantics=("parallel",),
            vmem_limit_bytes=32 * 1024 * 1024),
    )(x_p, w1_p, b1_f, w2_b, b2_f, w3_b, b3_f)

    return out[:B]


def init_linear(key, fan_in, fan_out):
    """Deterministic init matching PyTorch nn.Linear default:
    uniform(-1/sqrt(fan_in), 1/sqrt(fan_in)). Weight stored as [in, out]."""
    kw, kb = jax.random.split(key)
    bound = 1.0 / jnp.sqrt(jnp.float32(fan_in))
    w = jax.random.uniform(kw, (fan_in, fan_out), jnp.float32, -bound, bound)
    b = jax.random.uniform(kb, (1, fan_out), jnp.float32, -bound, bound)
    return w, b


def reference_forward(x, w1, b1, w2, b2, w3, b3):
    """Reference following the same bf16 quantization path as the kernel,
    with f32 accumulation."""
    q = lambda a: a.astype(jnp.bfloat16).astype(jnp.float32)
    h1 = jnp.maximum(q(x) @ q(w1) + b1, 0.0)
    h2 = jnp.maximum(q(h1) @ q(w2) + b2, 0.0)
    return q(h2) @ q(w3) + b3


if __name__ == "__main__":
    key = jax.random.PRNGKey(0)
    k_x, k1, k2, k3 = jax.random.split(key, 4)

    batch = 8
    x = jax.random.normal(k_x, (batch, IN_F), jnp.float32)

    w1, b1 = init_linear(k1, IN_F, H1)
    w2, b2 = init_linear(k2, H1, H2)
    w3, b3 = init_linear(k3, H2, OUT_F)

    # Hoisted, one-time parameter preparation (not paid per forward call).
    params = jax.block_until_ready(prepare_params(w1, b1, w2, b2, w3, b3))

    fwd = jax.jit(ann_forward)
    out = jax.block_until_ready(fwd(x, params))

    ref = reference_forward(x, w1, b1, w2, b2, w3, b3)
    assert out.shape == (batch, OUT_F)
    assert jnp.allclose(out, ref, atol=2e-2, rtol=2e-2), (
        float(jnp.max(jnp.abs(out - ref))))

    print("KERNEL_OK")
</pallas_src>

<mosaic_0001>
module attributes {stable_mosaic.version = 11 : i64} {
  func.func @ann_kernel(%arg0: i32, %arg1: memref<16x384xbf16, #tpu.memory_space<vmem>>, %arg2: memref<384x512xbf16, #tpu.memory_space<vmem>>, %arg3: memref<1x512xf32, #tpu.memory_space<vmem>>, %arg4: memref<512x256xbf16, #tpu.memory_space<vmem>>, %arg5: memref<1x256xf32, #tpu.memory_space<vmem>>, %arg6: memref<256x128xbf16, #tpu.memory_space<vmem>>, %arg7: memref<1x128xf32, #tpu.memory_space<vmem>>, %arg8: memref<16x128xf32, #tpu.memory_space<vmem>>) attributes {dimension_semantics = [#tpu.dimension_semantics<parallel>], iteration_bounds = array<i64: 1>, scalar_prefetch = 0 : i64, scratch_operands = 0 : i64, tpu.core_type = #tpu.core_type<tc>, window_params = [{transform_indices = @transform_0, window_bounds = array<i64: 16, 384>}, {pipeline_mode = #tpu.pipeline_mode<synchronous>, transform_indices = @transform_1, window_bounds = array<i64: 384, 512>}, {pipeline_mode = #tpu.pipeline_mode<synchronous>, transform_indices = @transform_2, window_bounds = array<i64: 1, 512>}, {pipeline_mode = #tpu.pipeline_mode<synchronous>, transform_indices = @transform_3, window_bounds = array<i64: 512, 256>}, {pipeline_mode = #tpu.pipeline_mode<synchronous>, transform_indices = @transform_4, window_bounds = array<i64: 1, 256>}, {pipeline_mode = #tpu.pipeline_mode<synchronous>, transform_indices = @transform_5, window_bounds = array<i64: 256, 128>}, {pipeline_mode = #tpu.pipeline_mode<synchronous>, transform_indices = @transform_6, window_bounds = array<i64: 1, 128>}, {transform_indices = @transform_7, window_bounds = array<i64: 16, 128>}]} {
    %c0 = arith.constant 0 : index
    %c0_0 = arith.constant 0 : index
    %0 = vector.load %arg1[%c0, %c0_0] : memref<16x384xbf16, #tpu.memory_space<vmem>>, vector<16x384xbf16>
    %c0_1 = arith.constant 0 : index
    %c0_2 = arith.constant 0 : index
    %1 = vector.load %arg2[%c0_1, %c0_2] : memref<384x512xbf16, #tpu.memory_space<vmem>>, vector<384x512xbf16>
    %cst = arith.constant dense<0.000000e+00> : vector<16x512xf32>
    %2 = tpu.matmul %0, %1, %cst {dimension_numbers = #tpu.dot_dimension_numbers<[1], [0], [0], [1], [0, 0, 1, 1], [], []>} : vector<16x384xbf16>, vector<384x512xbf16>, vector<16x512xf32> -> vector<16x512xf32>
    %c0_3 = arith.constant 0 : index
    %c0_4 = arith.constant 0 : index
    %3 = vector.load %arg3[%c0_3, %c0_4] : memref<1x512xf32, #tpu.memory_space<vmem>>, vector<1x512xf32>
    %4 = vector.broadcast %3 : vector<1x512xf32> to vector<16x512xf32>
    %5 = arith.addf %2, %4 : vector<16x512xf32>
    %cst_5 = arith.constant 0.000000e+00 : f32
    %6 = vector.broadcast %cst_5 : f32 to vector<16x512xf32>
    %7 = arith.maximumf %5, %6 : vector<16x512xf32>
    %8 = arith.truncf %7 : vector<16x512xf32> to vector<16x512xbf16>
    %c0_6 = arith.constant 0 : index
    %c0_7 = arith.constant 0 : index
    %9 = vector.load %arg4[%c0_6, %c0_7] : memref<512x256xbf16, #tpu.memory_space<vmem>>, vector<512x256xbf16>
    %cst_8 = arith.constant dense<0.000000e+00> : vector<16x256xf32>
    %10 = tpu.matmul %8, %9, %cst_8 {dimension_numbers = #tpu.dot_dimension_numbers<[1], [0], [0], [1], [0, 0, 1, 1], [], []>} : vector<16x512xbf16>, vector<512x256xbf16>, vector<16x256xf32> -> vector<16x256xf32>
    %c0_9 = arith.constant 0 : index
    %c0_10 = arith.constant 0 : index
    %11 = vector.load %arg5[%c0_9, %c0_10] : memref<1x256xf32, #tpu.memory_space<vmem>>, vector<1x256xf32>
    %12 = vector.broadcast %11 : vector<1x256xf32> to vector<16x256xf32>
    %13 = arith.addf %10, %12 : vector<16x256xf32>
    %cst_11 = arith.constant 0.000000e+00 : f32
    %14 = vector.broadcast %cst_11 : f32 to vector<16x256xf32>
    %15 = arith.maximumf %13, %14 : vector<16x256xf32>
    %16 = arith.truncf %15 : vector<16x256xf32> to vector<16x256xbf16>
    %c0_12 = arith.constant 0 : index
    %c0_13 = arith.constant 0 : index
    %17 = vector.load %arg6[%c0_12, %c0_13] : memref<256x128xbf16, #tpu.memory_space<vmem>>, vector<256x128xbf16>
    %cst_14 = arith.constant dense<0.000000e+00> : vector<16x128xf32>
    %18 = tpu.matmul %16, %17, %cst_14 {dimension_numbers = #tpu.dot_dimension_numbers<[1], [0], [0], [1], [0, 0, 1, 1], [], []>} : vector<16x256xbf16>, vector<256x128xbf16>, vector<16x128xf32> -> vector<16x128xf32>
    %c0_15 = arith.constant 0 : index
    %c0_16 = arith.constant 0 : index
    %19 = vector.load %arg7[%c0_15, %c0_16] : memref<1x128xf32, #tpu.memory_space<vmem>>, vector<1x128xf32>
    %20 = vector.broadcast %19 : vector<1x128xf32> to vector<16x128xf32>
    %21 = arith.addf %18, %20 : vector<16x128xf32>
    %c0_17 = arith.constant 0 : index
    %c0_18 = arith.constant 0 : index
    %22 = vector.load %arg8[%c0_17, %c0_18] : memref<16x128xf32, #tpu.memory_space<vmem>>, vector<16x128xf32>
    tpu.vector_store %arg8[%c0_17, %c0_18], %21 {strides = array<i32>} : memref<16x128xf32, #tpu.memory_space<vmem>>, vector<16x128xf32>,
    return
  }
  func.func @transform_0(%arg0: i32) -> (i32, i32) {
    %c0_i32 = arith.constant 0 : i32
    %c0_i32_0 = arith.constant 0 : i32
    return %arg0, %c0_i32 : i32, i32
  }
  func.func @transform_1(%arg0: i32) -> (i32, i32) {
    %c0_i32 = arith.constant 0 : i32
    %c0_i32_0 = arith.constant 0 : i32
    %c0_i32_1 = arith.constant 0 : i32
    return %c0_i32, %c0_i32_0 : i32, i32
  }
  func.func @transform_2(%arg0: i32) -> (i32, i32) {
    %c0_i32 = arith.constant 0 : i32
    %c0_i32_0 = arith.constant 0 : i32
    %c0_i32_1 = arith.constant 0 : i32
    return %c0_i32, %c0_i32_0 : i32, i32
  }
  func.func @transform_3(%arg0: i32) -> (i32, i32) {
    %c0_i32 = arith.constant 0 : i32
    %c0_i32_0 = arith.constant 0 : i32
    %c0_i32_1 = arith.constant 0 : i32
    return %c0_i32, %c0_i32_0 : i32, i32
  }
  func.func @transform_4(%arg0: i32) -> (i32, i32) {
    %c0_i32 = arith.constant 0 : i32
    %c0_i32_0 = arith.constant 0 : i32
    %c0_i32_1 = arith.constant 0 : i32
    return %c0_i32, %c0_i32_0 : i32, i32
  }
  func.func @transform_5(%arg0: i32) -> (i32, i32) {
    %c0_i32 = arith.constant 0 : i32
    %c0_i32_0 = arith.constant 0 : i32
    %c0_i32_1 = arith.constant 0 : i32
    return %c0_i32, %c0_i32_0 : i32, i32
  }
  func.func @transform_6(%arg0: i32) -> (i32, i32) {
    %c0_i32 = arith.constant 0 : i32
    %c0_i32_0 = arith.constant 0 : i32
    %c0_i32_1 = arith.constant 0 : i32
    return %c0_i32, %c0_i32_0 : i32, i32
  }
  func.func @transform_7(%arg0: i32) -> (i32, i32) {
    %c0_i32 = arith.constant 0 : i32
    %c0_i32_0 = arith.constant 0 : i32
    return %arg0, %c0_i32 : i32, i32
  }
}

</mosaic_0001>

<llo_original>
// kernel: ann_forward.1
$region0: #{ann_forward.1}
  #allocation0 [shape = 'u32[]', space=smem, size = 0x4, offset = 0x4, fixed_abs, tag = 'smem constant byte address 0x4 - core index']
  #allocation1 [shape = 'u32[144,128]{1,0:T(1,128)}', space=vmem, size = 0x12000, scoped, tag = 'internal scratch']
  %s0 = inlined_call_operand.vmem [shape: bf16[16,384], index: 0, kind: input, shape index: {}]
  %s1 = inlined_call_operand.hbm [shape: bf16[384,512], index: 1, kind: input, shape index: {}]
  %s2 = inlined_call_operand.vmem [shape: f32[1,512], index: 2, kind: input, shape index: {}]
  %s3 = inlined_call_operand.hbm [shape: bf16[512,256], index: 3, kind: input, shape index: {}]
  %s4 = inlined_call_operand.vmem [shape: f32[1,256], index: 4, kind: input, shape index: {}]
  %s5 = inlined_call_operand.hbm [shape: bf16[256,128], index: 5, kind: input, shape index: {}]
  %s6 = inlined_call_operand.vmem [shape: f32[1,128], index: 6, kind: input, shape index: {}]
  %s7 = inlined_call_operand.vmem [shape: f32[16,128], index: 7, kind: output, shape index: {}]
  %s8 = sld [smem:[#allocation0]]
  $region50: #{ann_forward.1} parent=0
    _
  %s10 = ssub.s32 1, %s8
  %s11 = scalar_select 0, %s10, %s8
  $region1: #{ann_forward.1} parent=0
    #allocation2 [shape = 'u8[393216]{0}', space=vmem, size = 0x60000, scoped, tag = 'input window, operand 1, single buffered']
    #allocation3 [shape = 's32[1]{0}', space=sflag, size = 0x4, scoped, tag = 'scoped memory for ann_forward.1']
    #allocation4 [shape = 'u8[262144]{0}', space=vmem, size = 0x40000, scoped, tag = 'input window, operand 3, single buffered']
    #allocation5 [shape = 's32[1]{0}', space=sflag, size = 0x4, scoped, tag = 'scoped memory for ann_forward.1']
    #allocation6 [shape = 'u8[65536]{0}', space=vmem, size = 0x10000, scoped, tag = 'input window, operand 5, single buffered']
    %12 = vsyncpa [#allocation3], 0
    %13 = vsyncpa [#allocation5], 0
    // Predicated region
    $region2: #{ann_forward.1} parent=1 // pred_check
      _
    $region3: #{ann_forward.1} parent=1 // pred_check_branch
      %15 = sbr.rel (0) target = $region5
    $region4: #{ann_forward.1} parent=1 // pred_region
      _
    $region5: #{ann_forward.1} parent=1 // pred_fallthru
      _
    // Predicated region
    $region6: #{ann_forward.1} parent=1 // pred_check
      _
    $region7: #{ann_forward.1} parent=1 // pred_check_branch
      %17 = sbr.rel (0) target = $region9
    $region8: #{ann_forward.1} parent=1 // pred_region
      %s19 = ssub.s32 12288, 12288
      %20 = vsyncadd [#allocation3], %s19
      %s21 = sshll.u32 [#allocation2], 4
      %s22 = int_to_ptr.vmem [resolvable:$true] %s21
      %27 = dma.hbm_to_vmem [thread:$0]  %s1, 12288, %s22, [#allocation3], 256, 256, 16
    $region9: #{ann_forward.1} parent=1 // pred_fallthru
      _
    // Predicated region
    $region10: #{ann_forward.1} parent=1 // pred_check
      _
    $region11: #{ann_forward.1} parent=1 // pred_check_branch
      %29 = sbr.rel (0) target = $region13
    $region12: #{ann_forward.1} parent=1 // pred_region
      _
    $region13: #{ann_forward.1} parent=1 // pred_fallthru
      _
    // Predicated region
    $region14: #{ann_forward.1} parent=1 // pred_check
      _
    $region15: #{ann_forward.1} parent=1 // pred_check_branch
      %31 = sbr.rel (0) target = $region17
    $region16: #{ann_forward.1} parent=1 // pred_region
      %s33 = ssub.s32 8192, 8192
      %34 = vsyncadd [#allocation5], %s33
      %s35 = sshll.u32 [#allocation4], 4
      %s36 = int_to_ptr.vmem [resolvable:$true] %s35
      %41 = dma.hbm_to_vmem [thread:$0]  %s3, 8192, %s36, [#allocation5], 128, 128, 8
    $region17: #{ann_forward.1} parent=1 // pred_fallthru
      _
    // Predicated region
    $region18: #{ann_forward.1} parent=1 // pred_check
      _
    $region19: #{ann_forward.1} parent=1 // pred_check_branch
      %43 = sbr.rel (0) target = $region21
    $region20: #{ann_forward.1} parent=1 // pred_region
      _
    $region21: #{ann_forward.1} parent=1 // pred_fallthru
      _
    // Predicated region
    $region22: #{ann_forward.1} parent=1 // pred_check
      _
    $region23: #{ann_forward.1} parent=1 // pred_check_branch
      %45 = sbr.rel (0) target = $region25
    $region24: #{ann_forward.1} parent=1 // pred_region
      %s47 = ssub.s32 2048, 2048
      %48 = vsyncadd [#allocation5], %s47
      %s49 = sshll.u32 [#allocation6], 4
      %s50 = int_to_ptr.vmem [resolvable:$true] %s49
      %55 = dma.hbm_to_vmem [thread:$0]  %s5, 2048, %s50, [#allocation5], 64, 64, 4
    $region25: #{ann_forward.1} parent=1 // pred_fallthru
      _
    // Predicated region
    $region26: #{ann_forward.1} parent=1 // pred_check
      _
    $region27: #{ann_forward.1} parent=1 // pred_check_branch
      %57 = sbr.rel (0) target = $region29
    $region28: #{ann_forward.1} parent=1 // pred_region
      _
    $region29: #{ann_forward.1} parent=1 // pred_fallthru
      _
    // Predicated region
    $region30: #{ann_forward.1} parent=1 // pred_check
      _
    $region31: #{ann_forward.1} parent=1 // pred_check_branch
      %59 = sbr.rel (0) target = $region33
    $region32: #{ann_forward.1} parent=1 // pred_region
      %60 = dma.done [#allocation3], 12288
    $region33: #{ann_forward.1} parent=1 // pred_fallthru
      _
    // Predicated region
    $region34: #{ann_forward.1} parent=1 // pred_check
      _
    $region35: #{ann_forward.1} parent=1 // pred_check_branch
      %62 = sbr.rel (0) target = $region37
    $region36: #{ann_forward.1} parent=1 // pred_region
      %63 = dma.done [#allocation5], 8192
    $region37: #{ann_forward.1} parent=1 // pred_fallthru
      _
    // Predicated region
    $region38: #{ann_forward.1} parent=1 // pred_check
      _
    $region39: #{ann_forward.1} parent=1 // pred_check_branch
      %65 = sbr.rel (0) target = $region41
    $region40: #{ann_forward.1} parent=1 // pred_region
      %66 = dma.done [#allocation5], 2048
    $region41: #{ann_forward.1} parent=1 // pred_fallthru
      _
    %v68 = vld [vmem:[%s0] sm:$0xff]
    %v69 = vld [vmem:[%s0 + $0x8] sm:$0xf]
    %v70 = vld [vmem:[%s0 + $0xc] sm:$0xff]
    %v71 = vld [vmem:[%s0 + $0x14] sm:$0xf]
    %v72 = vld [vmem:[#allocation2] sm:$0xff]
    %v73 = vld [vmem:[#allocation2 + $0x8] sm:$0xff]
    %v74 = vld [vmem:[#allocation2 + $0x10] sm:$0xff]
    %v75 = vld [vmem:[#allocation2 + $0x18] sm:$0xff]
    %v76 = vld [vmem:[#allocation2 + $0x20] sm:$0xff]
    %v77 = vld [vmem:[#allocation2 + $0x28] sm:$0xff]
    %v78 = vld [vmem:[#allocation2 + $0x30] sm:$0xff]
    %v79 = vld [vmem:[#allocation2 + $0x38] sm:$0xff]
    %v80 = vld [vmem:[#allocation2 + $0x40] sm:$0xff]
    %v81 = vld [vmem:[#allocation2 + $0x48] sm:$0xff]
    %v82 = vld [vmem:[#allocation2 + $0x50] sm:$0xff]
    %v83 = vld [vmem:[#allocation2 + $0x58] sm:$0xff]
    %v84 = vld [vmem:[#allocation2 + $0x60] sm:$0xff]
    %v85 = vld [vmem:[#allocation2 + $0x68] sm:$0xff]
    %v86 = vld [vmem:[#allocation2 + $0x70] sm:$0xff]
    %v87 = vld [vmem:[#allocation2 + $0x78] sm:$0xff]
    %v88 = vld [vmem:[#allocation2 + $0x80] sm:$0xff]
    %v89 = vld [vmem:[#allocation2 + $0x88] sm:$0xff]
    %v90 = vld [vmem:[#allocation2 + $0x90] sm:$0xff]
    %v91 = vld [vmem:[#allocation2 + $0x98] sm:$0xff]
    %v92 = vld [vmem:[#allocation2 + $0xa0] sm:$0xff]
    %v93 = vld [vmem:[#allocation2 + $0xa8] sm:$0xff]
    %v94 = vld [vmem:[#allocation2 + $0xb0] sm:$0xff]
    %v95 = vld [vmem:[#allocation2 + $0xb8] sm:$0xff]
    %v96 = vld [vmem:[#allocation2 + $0xc0] sm:$0xff]
    %v97 = vld [vmem:[#allocation2 + $0xc8] sm:$0xff]
    %v98 = vld [vmem:[#allocation2 + $0xd0] sm:$0xff]
    %v99 = vld [vmem:[#allocation2 + $0xd8] sm:$0xff]
    %v100 = vld [vmem:[#allocation2 + $0xe0] sm:$0xff]
    %v101 = vld [vmem:[#allocation2 + $0xe8] sm:$0xff]
    %v102 = vld [vmem:[#allocation2 + $0xf0] sm:$0xff]
    %v103 = vld [vmem:[#allocation2 + $0xf8] sm:$0xff]
    %v104 = vld [vmem:[#allocation2 + $0x100] sm:$0xff]
    %v105 = vld [vmem:[#allocation2 + $0x108] sm:$0xff]
    %v106 = vld [vmem:[#allocation2 + $0x110] sm:$0xff]
    %v107 = vld [vmem:[#allocation2 + $0x118] sm:$0xff]
    %v108 = vld [vmem:[#allocation2 + $0x120] sm:$0xff]
    %v109 = vld [vmem:[#allocation2 + $0x128] sm:$0xff]
    %v110 = vld [vmem:[#allocation2 + $0x130] sm:$0xff]
    %v111 = vld [vmem:[#allocation2 + $0x138] sm:$0xff]
    %v112 = vld [vmem:[#allocation2 + $0x140] sm:$0xff]
    %v113 = vld [vmem:[#allocation2 + $0x148] sm:$0xff]
    %v114 = vld [vmem:[#allocation2 + $0x150] sm:$0xff]
    %v115 = vld [vmem:[#allocation2 + $0x158] sm:$0xff]
    %v116 = vld [vmem:[#allocation2 + $0x160] sm:$0xff]
    %v117 = vld [vmem:[#allocation2 + $0x168] sm:$0xff]
    %v118 = vld [vmem:[#allocation2 + $0x170] sm:$0xff]
    %v119 = vld [vmem:[#allocation2 + $0x178] sm:$0xff]
    %v120 = vld [vmem:[#allocation2 + $0x180] sm:$0xff]
    %v121 = vld [vmem:[#allocation2 + $0x188] sm:$0xff]
    %v122 = vld [vmem:[#allocation2 + $0x190] sm:$0xff]
    %v123 = vld [vmem:[#allocation2 + $0x198] sm:$0xff]
    %v124 = vld [vmem:[#allocation2 + $0x1a0] sm:$0xff]
    %v125 = vld [vmem:[#allocation2 + $0x1a8] sm:$0xff]
    %v126 = vld [vmem:[#allocation2 + $0x1b0] sm:$0xff]
    %v127 = vld [vmem:[#allocation2 + $0x1b8] sm:$0xff]
    %v128 = vld [vmem:[#allocation2 + $0x1c0] sm:$0xff]
    %v129 = vld [vmem:[#allocation2 + $0x1c8] sm:$0xff]
    %v130 = vld [vmem:[#allocation2 + $0x1d0] sm:$0xff]
    %v131 = vld [vmem:[#allocation2 + $0x1d8] sm:$0xff]
    %v132 = vld [vmem:[#allocation2 + $0x1e0] sm:$0xff]
    %v133 = vld [vmem:[#allocation2 + $0x1e8] sm:$0xff]
    %v134 = vld [vmem:[#allocation2 + $0x1f0] sm:$0xff]
    %v135 = vld [vmem:[#allocation2 + $0x1f8] sm:$0xff]
    %v136 = vld [vmem:[#allocation2 + $0x200] sm:$0xff]
    %v137 = vld [vmem:[#allocation2 + $0x208] sm:$0xff]
    %v138 = vld [vmem:[#allocation2 + $0x210] sm:$0xff]
    %v139 = vld [vmem:[#allocation2 + $0x218] sm:$0xff]
    %v140 = vld [vmem:[#allocation2 + $0x220] sm:$0xff]
    %v141 = vld [vmem:[#allocation2 + $0x228] sm:$0xff]
    %v142 = vld [vmem:[#allocation2 + $0x230] sm:$0xff]
    %v143 = vld [vmem:[#allocation2 + $0x238] sm:$0xff]
    %v144 = vld [vmem:[#allocation2 + $0x240] sm:$0xff]
    %v145 = vld [vmem:[#allocation2 + $0x248] sm:$0xff]
    %v146 = vld [vmem:[#allocation2 + $0x250] sm:$0xff]
    %v147 = vld [vmem:[#allocation2 + $0x258] sm:$0xff]
    %v148 = vld [vmem:[#allocation2 + $0x260] sm:$0xff]
    %v149 = vld [vmem:[#allocation2 + $0x268] sm:$0xff]
    %v150 = vld [vmem:[#allocation2 + $0x270] sm:$0xff]
    %v151 = vld [vmem:[#allocation2 + $0x278] sm:$0xff]
    %v152 = vld [vmem:[#allocation2 + $0x280] sm:$0xff]
    %v153 = vld [vmem:[#allocation2 + $0x288] sm:$0xff]
    %v154 = vld [vmem:[#allocation2 + $0x290] sm:$0xff]
    %v155 = vld [vmem:[#allocation2 + $0x298] sm:$0xff]
    %v156 = vld [vmem:[#allocation2 + $0x2a0] sm:$0xff]
    %v157 = vld [vmem:[#allocation2 + $0x2a8] sm:$0xff]
    %v158 = vld [vmem:[#allocation2 + $0x2b0] sm:$0xff]
    %v159 = vld [vmem:[#allocation2 + $0x2b8] sm:$0xff]
    %v160 = vld [vmem:[#allocation2 + $0x2c0] sm:$0xff]
    %v161 = vld [vmem:[#allocation2 + $0x2c8] sm:$0xff]
    %v162 = vld [vmem:[#allocation2 + $0x2d0] sm:$0xff]
    %v163 = vld [vmem:[#allocation2 + $0x2d8] sm:$0xff]
    %v164 = vld [vmem:[#allocation2 + $0x2e0] sm:$0xff]
    %v165 = vld [vmem:[#allocation2 + $0x2e8] sm:$0xff]
    %v166 = vld [vmem:[#allocation2 + $0x2f0] sm:$0xff]
    %v167 = vld [vmem:[#allocation2 + $0x2f8] sm:$0xff]
    %v168 = vld [vmem:[%s2] sm:$0xf]
    %v170 = vlaneseq
    %v171 = vshrl.u32 %v170, 7
    %v172 = vsub.s32 0, %v171
    %v173 = vrot.slane %v168, %v172
    %v174 = vlaneseq
    %v175 = vshrl.u32 %v174, 7
    %v176 = vsub.s32 1, %v175
    %v177 = vrot.slane %v168, %v176
    %v178 = vlaneseq
    %v179 = vshrl.u32 %v178, 7
    %v180 = vsub.s32 2, %v179
    %v181 = vrot.slane %v168, %v180
    %v182 = vlaneseq
    %v183 = vshrl.u32 %v182, 7
    %v184 = vsub.s32 3, %v183
    %v185 = vrot.slane %v168, %v184
    %v194 = vunpack.c.l.b16 %v68
    %v195 = vunpack.c.h.b16 %v68
    %v196 = vunpack.c.l.b16 %v69
    %v197 = vunpack.c.l.b16 %v70
    %v198 = vunpack.c.h.b16 %v70
    %v199 = vunpack.c.l.b16 %v71
    %v200 = vpack.c.b16 %v197, %v194
    %v201 = vpack.c.b16 %v198, %v195
    %v202 = vpack.c.b16 %v199, %v196
    %v302 = vunpack.c.l.b16 %v72
    %v303 = vunpack.c.h.b16 %v72
    %v304 = vunpack.c.l.b16 %v73
    %v305 = vunpack.c.h.b16 %v73
    %v306 = vunpack.c.l.b16 %v74
    %v307 = vunpack.c.h.b16 %v74
    %v308 = vunpack.c.l.b16 %v75
    %v309 = vunpack.c.h.b16 %v75
    %v310 = vunpack.c.l.b16 %v76
    %v311 = vunpack.c.h.b16 %v76
    %v312 = vunpack.c.l.b16 %v77
    %v313 = vunpack.c.h.b16 %v77
    %v314 = vunpack.c.l.b16 %v78
    %v315 = vunpack.c.h.b16 %v78
    %v316 = vunpack.c.l.b16 %v79
    %v317 = vunpack.c.h.b16 %v79
    %v318 = vunpack.c.l.b16 %v80
    %v319 = vunpack.c.h.b16 %v80
    %v320 = vunpack.c.l.b16 %v81
    %v321 = vunpack.c.h.b16 %v81
    %v322 = vunpack.c.l.b16 %v82
    %v323 = vunpack.c.h.b16 %v82
    %v324 = vunpack.c.l.b16 %v83
    %v325 = vunpack.c.h.b16 %v83
    %v326 = vunpack.c.l.b16 %v84
    %v327 = vunpack.c.h.b16 %v84
    %v328 = vunpack.c.l.b16 %v85
    %v329 = vunpack.c.h.b16 %v85
    %v330 = vunpack.c.l.b16 %v86
    %v331 = vunpack.c.h.b16 %v86
    %v332 = vunpack.c.l.b16 %v87
    %v333 = vunpack.c.h.b16 %v87
    %v334 = vunpack.c.l.b16 %v88
    %v335 = vunpack.c.h.b16 %v88
    %v336 = vunpack.c.l.b16 %v89
    %v337 = vunpack.c.h.b16 %v89
    %v338 = vunpack.c.l.b16 %v90
    %v339 = vunpack.c.h.b16 %v90
    %v340 = vunpack.c.l.b16 %v91
    %v341 = vunpack.c.h.b16 %v91
    %v342 = vunpack.c.l.b16 %v92
    %v343 = vunpack.c.h.b16 %v92
    %v344 = vunpack.c.l.b16 %v93
    %v345 = vunpack.c.h.b16 %v93
    %v346 = vunpack.c.l.b16 %v94
    %v347 = vunpack.c.h.b16 %v94
    %v348 = vunpack.c.l.b16 %v95
    %v349 = vunpack.c.h.b16 %v95
    %v350 = vunpack.c.l.b16 %v96
    %v351 = vunpack.c.h.b16 %v96
    %v352 = vunpack.c.l.b16 %v97
    %v353 = vunpack.c.h.b16 %v97
    %v354 = vunpack.c.l.b16 %v98
    %v355 = vunpack.c.h.b16 %v98
    %v356 = vunpack.c.l.b16 %v99
    %v357 = vunpack.c.h.b16 %v99
    %v358 = vunpack.c.l.b16 %v100
    %v359 = vunpack.c.h.b16 %v100
    %v360 = vunpack.c.l.b16 %v101
    %v361 = vunpack.c.h.b16 %v101
    %v362 = vunpack.c.l.b16 %v102
    %v363 = vunpack.c.h.b16 %v102
    %v364 = vunpack.c.l.b16 %v103
    %v365 = vunpack.c.h.b16 %v103
    %v366 = vunpack.c.l.b16 %v104
    %v367 = vunpack.c.h.b16 %v104
    %v368 = vunpack.c.l.b16 %v105
    %v369 = vunpack.c.h.b16 %v105
    %v370 = vunpack.c.l.b16 %v106
    %v371 = vunpack.c.h.b16 %v106
    %v372 = vunpack.c.l.b16 %v107
    %v373 = vunpack.c.h.b16 %v107
    %v374 = vunpack.c.l.b16 %v108
    %v375 = vunpack.c.h.b16 %v108
    %v376 = vunpack.c.l.b16 %v109
    %v377 = vunpack.c.h.b16 %v109
    %v378 = vunpack.c.l.b16 %v110
    %v379 = vunpack.c.h.b16 %v110
    %v380 = vunpack.c.l.b16 %v111
    %v381 = vunpack.c.h.b16 %v111
    %v382 = vunpack.c.l.b16 %v112
    %v383 = vunpack.c.h.b16 %v112
    %v384 = vunpack.c.l.b16 %v113
    %v385 = vunpack.c.h.b16 %v113
    %v386 = vunpack.c.l.b16 %v114
    %v387 = vunpack.c.h.b16 %v114
    %v388 = vunpack.c.l.b16 %v115
    %v389 = vunpack.c.h.b16 %v115
    %v390 = vunpack.c.l.b16 %v116
    %v391 = vunpack.c.h.b16 %v116
    %v392 = vunpack.c.l.b16 %v117
    %v393 = vunpack.c.h.b16 %v117
    %v394 = vunpack.c.l.b16 %v118
    %v395 = vunpack.c.h.b16 %v118
    %v396 = vunpack.c.l.b16 %v119
    %v397 = vunpack.c.h.b16 %v119
    %v398 = vunpack.c.l.b16 %v120
    %v399 = vunpack.c.h.b16 %v120
    %v400 = vunpack.c.l.b16 %v121
    %v401 = vunpack.c.h.b16 %v121
    %v402 = vunpack.c.l.b16 %v122
    %v403 = vunpack.c.h.b16 %v122
    %v404 = vunpack.c.l.b16 %v123
    %v405 = vunpack.c.h.b16 %v123
    %v406 = vunpack.c.l.b16 %v124
    %v407 = vunpack.c.h.b16 %v124
    %v408 = vunpack.c.l.b16 %v125
    %v409 = vunpack.c.h.b16 %v125
    %v410 = vunpack.c.l.b16 %v126
    %v411 = vunpack.c.h.b16 %v126
    %v412 = vunpack.c.l.b16 %v127
    %v413 = vunpack.c.h.b16 %v127
    %v414 = vunpack.c.l.b16 %v128
    %v415 = vunpack.c.h.b16 %v128
    %v416 = vunpack.c.l.b16 %v129
    %v417 = vunpack.c.h.b16 %v129
    %v418 = vunpack.c.l.b16 %v130
    %v419 = vunpack.c.h.b16 %v130
    %v420 = vunpack.c.l.b16 %v131
    %v421 = vunpack.c.h.b16 %v131
    %v422 = vunpack.c.l.b16 %v132
    %v423 = vunpack.c.h.b16 %v132
    %v424 = vunpack.c.l.b16 %v133
    %v425 = vunpack.c.h.b16 %v133
    %v426 = vunpack.c.l.b16 %v134
    %v427 = vunpack.c.h.b16 %v134
    %v428 = vunpack.c.l.b16 %v135
    %v429 = vunpack.c.h.b16 %v135
    %v430 = vunpack.c.l.b16 %v136
    %v431 = vunpack.c.h.b16 %v136
    %v432 = vunpack.c.l.b16 %v137
    %v433 = vunpack.c.h.b16 %v137
    %v434 = vunpack.c.l.b16 %v138
    %v435 = vunpack.c.h.b16 %v138
    %v436 = vunpack.c.l.b16 %v139
    %v437 = vunpack.c.h.b16 %v139
    %v438 = vunpack.c.l.b16 %v140
    %v439 = vunpack.c.h.b16 %v140
    %v440 = vunpack.c.l.b16 %v141
    %v441 = vunpack.c.h.b16 %v141
    %v442 = vunpack.c.l.b16 %v142
    %v443 = vunpack.c.h.b16 %v142
    %v444 = vunpack.c.l.b16 %v143
    %v445 = vunpack.c.h.b16 %v143
    %v446 = vunpack.c.l.b16 %v144
    %v447 = vunpack.c.h.b16 %v144
    %v448 = vunpack.c.l.b16 %v145
    %v449 = vunpack.c.h.b16 %v145
    %v450 = vunpack.c.l.b16 %v146
    %v451 = vunpack.c.h.b16 %v146
    %v452 = vunpack.c.l.b16 %v147
    %v453 = vunpack.c.h.b16 %v147
    %v454 = vunpack.c.l.b16 %v148
    %v455 = vunpack.c.h.b16 %v148
    %v456 = vunpack.c.l.b16 %v149
    %v457 = vunpack.c.h.b16 %v149
    %v458 = vunpack.c.l.b16 %v150
    %v459 = vunpack.c.h.b16 %v150
    %v460 = vunpack.c.l.b16 %v151
    %v461 = vunpack.c.h.b16 %v151
    %v462 = vunpack.c.l.b16 %v152
    %v463 = vunpack.c.h.b16 %v152
    %v464 = vunpack.c.l.b16 %v153
    %v465 = vunpack.c.h.b16 %v153
    %v466 = vunpack.c.l.b16 %v154
    %v467 = vunpack.c.h.b16 %v154
    %v468 = vunpack.c.l.b16 %v155
    %v469 = vunpack.c.h.b16 %v155
    %v470 = vunpack.c.l.b16 %v156
    %v471 = vunpack.c.h.b16 %v156
    %v472 = vunpack.c.l.b16 %v157
    %v473 = vunpack.c.h.b16 %v157
    %v474 = vunpack.c.l.b16 %v158
    %v475 = vunpack.c.h.b16 %v158
    %v476 = vunpack.c.l.b16 %v159
    %v477 = vunpack.c.h.b16 %v159
    %v478 = vunpack.c.l.b16 %v160
    %v479 = vunpack.c.h.b16 %v160
    %v480 = vunpack.c.l.b16 %v161
    %v481 = vunpack.c.h.b16 %v161
    %v482 = vunpack.c.l.b16 %v162
    %v483 = vunpack.c.h.b16 %v162
    %v484 = vunpack.c.l.b16 %v163
    %v485 = vunpack.c.h.b16 %v163
    %v486 = vunpack.c.l.b16 %v164
    %v487 = vunpack.c.h.b16 %v164
    %v488 = vunpack.c.l.b16 %v165
    %v489 = vunpack.c.h.b16 %v165
    %v490 = vunpack.c.l.b16 %v166
    %v491 = vunpack.c.h.b16 %v166
    %v492 = vunpack.c.l.b16 %v167
    %v493 = vunpack.c.h.b16 %v167
    %v494 = vpack.c.b16 %v306, %v302
    %v495 = vpack.c.b16 %v307, %v303
    %v496 = vpack.c.b16 %v308, %v304
    %v497 = vpack.c.b16 %v309, %v305
    %v498 = vpack.c.b16 %v314, %v310
    %v499 = vpack.c.b16 %v315, %v311
    %v500 = vpack.c.b16 %v316, %v312
    %v501 = vpack.c.b16 %v317, %v313
    %v502 = vpack.c.b16 %v322, %v318
    %v503 = vpack.c.b16 %v323, %v319
    %v504 = vpack.c.b16 %v324, %v320
    %v505 = vpack.c.b16 %v325, %v321
    %v506 = vpack.c.b16 %v330, %v326
    %v507 = vpack.c.b16 %v331, %v327
    %v508 = vpack.c.b16 %v332, %v328
    %v509 = vpack.c.b16 %v333, %v329
    %v510 = vpack.c.b16 %v338, %v334
    %v511 = vpack.c.b16 %v339, %v335
    %v512 = vpack.c.b16 %v340, %v336
    %v513 = vpack.c.b16 %v341, %v337
    %v514 = vpack.c.b16 %v346, %v342
    %v515 = vpack.c.b16 %v347, %v343
    %v516 = vpack.c.b16 %v348, %v344
    %v517 = vpack.c.b16 %v349, %v345
    %v518 = vpack.c.b16 %v354, %v350
    %v519 = vpack.c.b16 %v355, %v351
    %v520 = vpack.c.b16 %v356, %v352
    %v521 = vpack.c.b16 %v357, %v353
    %v522 = vpack.c.b16 %v362, %v358
    %v523 = vpack.c.b16 %v363, %v359
    %v524 = vpack.c.b16 %v364, %v360
    %v525 = vpack.c.b16 %v365, %v361
    %v526 = vpack.c.b16 %v370, %v366
    %v527 = vpack.c.b16 %v371, %v367
    %v528 = vpack.c.b16 %v372, %v368
    %v529 = vpack.c.b16 %v373, %v369
    %v530 = vpack.c.b16 %v378, %v374
    %v531 = vpack.c.b16 %v379, %v375
    %v532 = vpack.c.b16 %v380, %v376
    %v533 = vpack.c.b16 %v381, %v377
    %v534 = vpack.c.b16 %v386, %v382
    %v535 = vpack.c.b16 %v387, %v383
    %v536 = vpack.c.b16 %v388, %v384
    %v537 = vpack.c.b16 %v389, %v385
    %v538 = vpack.c.b16 %v394, %v390
    %v539 = vpack.c.b16 %v395, %v391
    %v540 = vpack.c.b16 %v396, %v392
    %v541 = vpack.c.b16 %v397, %v393
    %v542 = vpack.c.b16 %v402, %v398
    %v543 = vpack.c.b16 %v403, %v399
    %v544 = vpack.c.b16 %v404, %v400
    %v545 = vpack.c.b16 %v405, %v401
    %v546 = vpack.c.b16 %v410, %v406
    %v547 = vpack.c.b16 %v411, %v407
    %v548 = vpack.c.b16 %v412, %v408
    %v549 = vpack.c.b16 %v413, %v409
    %v550 = vpack.c.b16 %v418, %v414
    %v551 = vpack.c.b16 %v419, %v415
    %v552 = vpack.c.b16 %v420, %v416
    %v553 = vpack.c.b16 %v421, %v417
    %v554 = vpack.c.b16 %v426, %v422
    %v555 = vpack.c.b16 %v427, %v423
    %v556 = vpack.c.b16 %v428, %v424
    %v557 = vpack.c.b16 %v429, %v425
    %v558 = vpack.c.b16 %v434, %v430
    %v559 = vpack.c.b16 %v435, %v431
    %v560 = vpack.c.b16 %v436, %v432
    %v561 = vpack.c.b16 %v437, %v433
    %v562 = vpack.c.b16 %v442, %v438
    %v563 = vpack.c.b16 %v443, %v439
    %v564 = vpack.c.b16 %v444, %v440
    %v565 = vpack.c.b16 %v445, %v441
    %v566 = vpack.c.b16 %v450, %v446
    %v567 = vpack.c.b16 %v451, %v447
    %v568 = vpack.c.b16 %v452, %v448
    %v569 = vpack.c.b16 %v453, %v449
    %v570 = vpack.c.b16 %v458, %v454
    %v571 = vpack.c.b16 %v459, %v455
    %v572 = vpack.c.b16 %v460, %v456
    %v573 = vpack.c.b16 %v461, %v457
    %v574 = vpack.c.b16 %v466, %v462
    %v575 = vpack.c.b16 %v467, %v463
    %v576 = vpack.c.b16 %v468, %v464
    %v577 = vpack.c.b16 %v469, %v465
    %v578 = vpack.c.b16 %v474, %v470
    %v579 = vpack.c.b16 %v475, %v471
    %v580 = vpack.c.b16 %v476, %v472
    %v581 = vpack.c.b16 %v477, %v473
    %v582 = vpack.c.b16 %v482, %v478
    %v583 = vpack.c.b16 %v483, %v479
    %v584 = vpack.c.b16 %v484, %v480
    %v585 = vpack.c.b16 %v485, %v481
    %v586 = vpack.c.b16 %v490, %v486
    %v587 = vpack.c.b16 %v491, %v487
    %v588 = vpack.c.b16 %v492, %v488
    %v589 = vpack.c.b16 %v493, %v489
    %686 = vmatprep.subr.bf16.mxu0 %v523
    %687 = vmatpush1.bf16.msra.mxu0 %v522
    %688 = vmatprep.subr.bf16.mxu0 %v519
    %689 = vmatpush1.bf16.msra.mxu0 %v518
    %690 = vmatprep.subr.bf16.mxu0 %v515
    %691 = vmatpush1.bf16.msra.mxu0 %v514
    %692 = vmatprep.subr.bf16.mxu0 %v511
    %693 = vmatpush1.bf16.msra.mxu0 %v510
    %694 = vmatprep.subr.bf16.mxu0 %v507
    %695 = vmatpush1.bf16.msra.mxu0 %v506
    %696 = vmatprep.subr.bf16.mxu0 %v503
    %697 = vmatpush1.bf16.msra.mxu0 %v502
    %698 = vmatprep.subr.bf16.mxu0 %v499
    %699 = vmatpush1.bf16.msra.mxu0 %v498
    %700 = vmatprep.subr.bf16.mxu0 %v495
    %701 = vmatpush1.bf16.msra.mxu0 %v494
    %702 = vmatprep.subr.bf16.mxu0 %v555
    %703 = vmatpush2.bf16.msra.mxu0 %v554
    %704 = vmatprep.subr.bf16.mxu0 %v551
    %705 = vmatpush2.bf16.msra.mxu0 %v550
    %706 = vmatprep.subr.bf16.mxu0 %v547
    %707 = vmatpush2.bf16.msra.mxu0 %v546
    %708 = vmatprep.subr.bf16.mxu0 %v543
    %709 = vmatpush2.bf16.msra.mxu0 %v542
    %710 = vmatprep.subr.bf16.mxu0 %v539
    %711 = vmatpush2.bf16.msra.mxu0 %v538
    %712 = vmatprep.subr.bf16.mxu0 %v535
    %713 = vmatpush2.bf16.msra.mxu0 %v534
    %714 = vmatprep.subr.bf16.mxu0 %v531
    %715 = vmatpush2.bf16.msra.mxu0 %v530
    %716 = vmatprep.subr.bf16.mxu0 %v527
    %717 = vmatpush2.bf16.msra.mxu0 %v526
    %718 = vmatprep.mubr.bf16.mxu0 %v201
    %719 = vmatmul.mubr.bf16.gmra.mxu0 %v200
    %v720 = vpop.f32.mrf.mxu0
    %v721 = vadd.f32 %v173, %v720
    %v722 = vpop.f32.mrf.mxu0
    %v723 = vadd.f32 %v177, %v722
    %v724 = vpop.f32.mrf.mxu0
    %v725 = vadd.f32 %v173, %v724
    %v726 = vpop.f32.mrf.mxu0
    %v727 = vadd.f32 %v177, %v726
    %728 = vdwg.mxu0
    %729 = vmatprep.subr.bf16.mxu0 %v587
    %730 = vmatpush1.bf16.msra.mxu0 %v586
    %731 = vmatprep.subr.bf16.mxu0 %v583
    %732 = vmatpush1.bf16.msra.mxu0 %v582
    %733 = vmatprep.subr.bf16.mxu0 %v579
    %734 = vmatpush1.bf16.msra.mxu0 %v578
    %735 = vmatprep.subr.bf16.mxu0 %v575
    %736 = vmatpush1.bf16.msra.mxu0 %v574
    %737 = vmatprep.subr.bf16.mxu0 %v571
    %738 = vmatpush1.bf16.msra.mxu0 %v570
    %739 = vmatprep.subr.bf16.mxu0 %v567
    %740 = vmatpush1.bf16.msra.mxu0 %v566
    %741 = vmatprep.subr.bf16.mxu0 %v563
    %742 = vmatpush1.bf16.msra.mxu0 %v562
    %743 = vmatprep.subr.bf16.mxu0 %v559
    %744 = vmatpush1.bf16.msra.mxu0 %v558
    %745 = vmatprep.subr.bf16.mxu0 0
    %746 = vmatpush2.bf16.msra.mxu0 0
    %747 = vmatprep.subr.bf16.mxu0 0
    %748 = vmatpush2.bf16.msra.mxu0 0
    %749 = vmatprep.subr.bf16.mxu0 0
    %750 = vmatpush2.bf16.msra.mxu0 0
    %751 = vmatprep.subr.bf16.mxu0 0
    %752 = vmatpush2.bf16.msra.mxu0 0
    %753 = vmatprep.subr.bf16.mxu0 0
    %754 = vmatpush2.bf16.msra.mxu0 0
    %755 = vmatprep.subr.bf16.mxu0 0
    %756 = vmatpush2.bf16.msra.mxu0 0
    %757 = vmatprep.subr.bf16.mxu0 0
    %758 = vmatpush2.bf16.msra.mxu0 0
    %759 = vmatprep.subr.bf16.mxu0 0
    %760 = vmatpush2.bf16.msra.mxu0 0
    %761 = vmatprep.mubr.bf16.mxu0 0
    %762 = vmatmul.mubr.bf16.gmra.mxu0 %v202
    %v763 = vpop.f32.mrf.mxu0
    %v764 = vadd.f32 %v721, %v763
    %v765 = vpop.f32.mrf.mxu0
    %v766 = vadd.f32 %v723, %v765
    %v767 = vpop.f32.mrf.mxu0
    %v768 = vadd.f32 %v725, %v767
    %v769 = vpop.f32.mrf.mxu0
    %v770 = vadd.f32 %v727, %v769
    %771 = vdwg.mxu0
    %772 = vmatprep.subr.bf16.mxu0 %v525
    %773 = vmatpush1.bf16.msra.mxu0 %v524
    %774 = vmatprep.subr.bf16.mxu0 %v521
    %775 = vmatpush1.bf16.msra.mxu0 %v520
    %776 = vmatprep.subr.bf16.mxu0 %v517
    %777 = vmatpush1.bf16.msra.mxu0 %v516
    %778 = vmatprep.subr.bf16.mxu0 %v513
    %779 = vmatpush1.bf16.msra.mxu0 %v512
    %780 = vmatprep.subr.bf16.mxu0 %v509
    %781 = vmatpush1.bf16.msra.mxu0 %v508
    %782 = vmatprep.subr.bf16.mxu0 %v505
    %783 = vmatpush1.bf16.msra.mxu0 %v504
    %784 = vmatprep.subr.bf16.mxu0 %v501
    %785 = vmatpush1.bf16.msra.mxu0 %v500
    %786 = vmatprep.subr.bf16.mxu0 %v497
    %787 = vmatpush1.bf16.msra.mxu0 %v496
    %788 = vmatprep.subr.bf16.mxu0 %v557
    %789 = vmatpush2.bf16.msra.mxu0 %v556
    %790 = vmatprep.subr.bf16.mxu0 %v553
    %791 = vmatpush2.bf16.msra.mxu0 %v552
    %792 = vmatprep.subr.bf16.mxu0 %v549
    %793 = vmatpush2.bf16.msra.mxu0 %v548
    %794 = vmatprep.subr.bf16.mxu0 %v545
    %795 = vmatpush2.bf16.msra.mxu0 %v544
    %796 = vmatprep.subr.bf16.mxu0 %v541
    %797 = vmatpush2.bf16.msra.mxu0 %v540
    %798 = vmatprep.subr.bf16.mxu0 %v537
    %799 = vmatpush2.bf16.msra.mxu0 %v536
    %800 = vmatprep.subr.bf16.mxu0 %v533
    %801 = vmatpush2.bf16.msra.mxu0 %v532
    %802 = vmatprep.subr.bf16.mxu0 %v529
    %803 = vmatpush2.bf16.msra.mxu0 %v528
    %804 = vmatprep.mubr.bf16.mxu0 %v201
    %805 = vmatmul.mubr.bf16.gmra.mxu0 %v200
    %v806 = vpop.f32.mrf.mxu0
    %v807 = vadd.f32 %v181, %v806
    %v808 = vpop.f32.mrf.mxu0
    %v809 = vadd.f32 %v185, %v808
    %v810 = vpop.f32.mrf.mxu0
    %v811 = vadd.f32 %v181, %v810
    %v812 = vpop.f32.mrf.mxu0
    %v813 = vadd.f32 %v185, %v812
    %814 = vdwg.mxu0
    %815 = vmatprep.subr.bf16.mxu0 %v589
    %816 = vmatpush1.bf16.msra.mxu0 %v588
    %817 = vmatprep.subr.bf16.mxu0 %v585
    %818 = vmatpush1.bf16.msra.mxu0 %v584
    %819 = vmatprep.subr.bf16.mxu0 %v581
    %820 = vmatpush1.bf16.msra.mxu0 %v580
    %821 = vmatprep.subr.bf16.mxu0 %v577
    %822 = vmatpush1.bf16.msra.mxu0 %v576
    %823 = vmatprep.subr.bf16.mxu0 %v573
    %824 = vmatpush1.bf16.msra.mxu0 %v572
    %825 = vmatprep.subr.bf16.mxu0 %v569
    %826 = vmatpush1.bf16.msra.mxu0 %v568
    %827 = vmatprep.subr.bf16.mxu0 %v565
    %828 = vmatpush1.bf16.msra.mxu0 %v564
    %829 = vmatprep.subr.bf16.mxu0 %v561
    %830 = vmatpush1.bf16.msra.mxu0 %v560
    %831 = vmatprep.subr.bf16.mxu0 0
    %832 = vmatpush2.bf16.msra.mxu0 0
    %833 = vmatprep.subr.bf16.mxu0 0
    %834 = vmatpush2.bf16.msra.mxu0 0
    %835 = vmatprep.subr.bf16.mxu0 0
    %836 = vmatpush2.bf16.msra.mxu0 0
    %837 = vmatprep.subr.bf16.mxu0 0
    %838 = vmatpush2.bf16.msra.mxu0 0
    %839 = vmatprep.subr.bf16.mxu0 0
    %840 = vmatpush2.bf16.msra.mxu0 0
    %841 = vmatprep.subr.bf16.mxu0 0
    %842 = vmatpush2.bf16.msra.mxu0 0
    %843 = vmatprep.subr.bf16.mxu0 0
    %844 = vmatpush2.bf16.msra.mxu0 0
    %845 = vmatprep.subr.bf16.mxu0 0
    %846 = vmatpush2.bf16.msra.mxu0 0
    %847 = vmatprep.mubr.bf16.mxu0 0
    %848 = vmatmul.mubr.bf16.gmra.mxu0 %v202
    %v849 = vpop.f32.mrf.mxu0
    %v850 = vadd.f32 %v807, %v849
    %v851 = vpop.f32.mrf.mxu0
    %v852 = vadd.f32 %v809, %v851
    %v853 = vpop.f32.mrf.mxu0
    %v854 = vadd.f32 %v811, %v853
    %v855 = vpop.f32.mrf.mxu0
    %v856 = vadd.f32 %v813, %v855
    %857 = vdwg.mxu0
    %v858 = vmax.f32 %v764, 0.0
    %v859 = vmax.f32 %v766, 0.0
    %v860 = vmax.f32 %v850, 0.0
    %v861 = vmax.f32 %v852, 0.0
    %v862 = vmax.f32 %v768, 0.0
    %v863 = vmax.f32 %v770, 0.0
    %v864 = vmax.f32 %v854, 0.0
    %v865 = vmax.f32 %v856, 0.0
    %v866 = vpack.c.bf16 %v862, %v858
    %v867 = vpack.c.bf16 %v863, %v859
    %v868 = vpack.c.bf16 %v864, %v860
    %v869 = vpack.c.bf16 %v865, %v861
    %v870 = vld [vmem:[#allocation4] sm:$0xff]
    %v871 = vld [vmem:[#allocation4 + $0x8] sm:$0xff]
    %v872 = vld [vmem:[#allocation4 + $0x10] sm:$0xff]
    %v873 = vld [vmem:[#allocation4 + $0x18] sm:$0xff]
    %v874 = vld [vmem:[#allocation4 + $0x20] sm:$0xff]
    %v875 = vld [vmem:[#allocation4 + $0x28] sm:$0xff]
    %v876 = vld [vmem:[#allocation4 + $0x30] sm:$0xff]
    %v877 = vld [vmem:[#allocation4 + $0x38] sm:$0xff]
    %v878 = vld [vmem:[#allocation4 + $0x40] sm:$0xff]
    %v879 = vld [vmem:[#allocation4 + $0x48] sm:$0xff]
    %v880 = vld [vmem:[#allocation4 + $0x50] sm:$0xff]
    %v881 = vld [vmem:[#allocation4 + $0x58] sm:$0xff]
    %v882 = vld [vmem:[#allocation4 + $0x60] sm:$0xff]
    %v883 = vld [vmem:[#allocation4 + $0x68] sm:$0xff]
    %v884 = vld [vmem:[#allocation4 + $0x70] sm:$0xff]
    %v885 = vld [vmem:[#allocation4 + $0x78] sm:$0xff]
    %v886 = vld [vmem:[#allocation4 + $0x80] sm:$0xff]
    %v887 = vld [vmem:[#allocation4 + $0x88] sm:$0xff]
    %v888 = vld [vmem:[#allocation4 + $0x90] sm:$0xff]
    %v889 = vld [vmem:[#allocation4 + $0x98] sm:$0xff]
    %v890 = vld [vmem:[#allocation4 + $0xa0] sm:$0xff]
    %v891 = vld [vmem:[#allocation4 + $0xa8] sm:$0xff]
    %v892 = vld [vmem:[#allocation4 + $0xb0] sm:$0xff]
    %v893 = vld [vmem:[#allocation4 + $0xb8] sm:$0xff]
    %v894 = vld [vmem:[#allocation4 + $0xc0] sm:$0xff]
    %v895 = vld [vmem:[#allocation4 + $0xc8] sm:$0xff]
    %v896 = vld [vmem:[#allocation4 + $0xd0] sm:$0xff]
    %v897 = vld [vmem:[#allocation4 + $0xd8] sm:$0xff]
    %v898 = vld [vmem:[#allocation4 + $0xe0] sm:$0xff]
    %v899 = vld [vmem:[#allocation4 + $0xe8] sm:$0xff]
    %v900 = vld [vmem:[#allocation4 + $0xf0] sm:$0xff]
    %v901 = vld [vmem:[#allocation4 + $0xf8] sm:$0xff]
    %v902 = vld [vmem:[#allocation4 + $0x100] sm:$0xff]
    %v903 = vld [vmem:[#allocation4 + $0x108] sm:$0xff]
    %v904 = vld [vmem:[#allocation4 + $0x110] sm:$0xff]
    %v905 = vld [vmem:[#allocation4 + $0x118] sm:$0xff]
    %v906 = vld [vmem:[#allocation4 + $0x120] sm:$0xff]
    %v907 = vld [vmem:[#allocation4 + $0x128] sm:$0xff]
    %v908 = vld [vmem:[#allocation4 + $0x130] sm:$0xff]
    %v909 = vld [vmem:[#allocation4 + $0x138] sm:$0xff]
    %v910 = vld [vmem:[#allocation4 + $0x140] sm:$0xff]
    %v911 = vld [vmem:[#allocation4 + $0x148] sm:$0xff]
    %v912 = vld [vmem:[#allocation4 + $0x150] sm:$0xff]
    %v913 = vld [vmem:[#allocation4 + $0x158] sm:$0xff]
    %v914 = vld [vmem:[#allocation4 + $0x160] sm:$0xff]
    %v915 = vld [vmem:[#allocation4 + $0x168] sm:$0xff]
    %v916 = vld [vmem:[#allocation4 + $0x170] sm:$0xff]
    %v917 = vld [vmem:[#allocation4 + $0x178] sm:$0xff]
    %v918 = vld [vmem:[#allocation4 + $0x180] sm:$0xff]
    %v919 = vld [vmem:[#allocation4 + $0x188] sm:$0xff]
    %v920 = vld [vmem:[#allocation4 + $0x190] sm:$0xff]
    %v921 = vld [vmem:[#allocation4 + $0x198] sm:$0xff]
    %v922 = vld [vmem:[#allocation4 + $0x1a0] sm:$0xff]
    %v923 = vld [vmem:[#allocation4 + $0x1a8] sm:$0xff]
    %v924 = vld [vmem:[#allocation4 + $0x1b0] sm:$0xff]
    %v925 = vld [vmem:[#allocation4 + $0x1b8] sm:$0xff]
    %v926 = vld [vmem:[#allocation4 + $0x1c0] sm:$0xff]
    %v927 = vld [vmem:[#allocation4 + $0x1c8] sm:$0xff]
    %v928 = vld [vmem:[#allocation4 + $0x1d0] sm:$0xff]
    %v929 = vld [vmem:[#allocation4 + $0x1d8] sm:$0xff]
    %v930 = vld [vmem:[#allocation4 + $0x1e0] sm:$0xff]
    %v931 = vld [vmem:[#allocation4 + $0x1e8] sm:$0xff]
    %v932 = vld [vmem:[#allocation4 + $0x1f0] sm:$0xff]
    %v933 = vld [vmem:[#allocation4 + $0x1f8] sm:$0xff]
    %v934 = vld [vmem:[%s4] sm:$0x3]
    %v936 = vlaneseq
    %v937 = vshrl.u32 %v936, 7
    %v938 = vsub.s32 0, %v937
    %v939 = vrot.slane %v934, %v938
    %v940 = vlaneseq
    %v941 = vshrl.u32 %v940, 7
    %v942 = vsub.s32 1, %v941
    %v943 = vrot.slane %v934, %v942
    %v1010 = vunpack.c.l.b16 %v870
    %v1011 = vunpack.c.h.b16 %v870
    %v1012 = vunpack.c.l.b16 %v871
    %v1013 = vunpack.c.h.b16 %v871
    %v1014 = vunpack.c.l.b16 %v872
    %v1015 = vunpack.c.h.b16 %v872
    %v1016 = vunpack.c.l.b16 %v873
    %v1017 = vunpack.c.h.b16 %v873
    %v1018 = vunpack.c.l.b16 %v874
    %v1019 = vunpack.c.h.b16 %v874
    %v1020 = vunpack.c.l.b16 %v875
    %v1021 = vunpack.c.h.b16 %v875
    %v1022 = vunpack.c.l.b16 %v876
    %v1023 = vunpack.c.h.b16 %v876
    %v1024 = vunpack.c.l.b16 %v877
    %v1025 = vunpack.c.h.b16 %v877
    %v1026 = vunpack.c.l.b16 %v878
    %v1027 = vunpack.c.h.b16 %v878
    %v1028 = vunpack.c.l.b16 %v879
    %v1029 = vunpack.c.h.b16 %v879
    %v1030 = vunpack.c.l.b16 %v880
    %v1031 = vunpack.c.h.b16 %v880
    %v1032 = vunpack.c.l.b16 %v881
    %v1033 = vunpack.c.h.b16 %v881
    %v1034 = vunpack.c.l.b16 %v882
    %v1035 = vunpack.c.h.b16 %v882
    %v1036 = vunpack.c.l.b16 %v883
    %v1037 = vunpack.c.h.b16 %v883
    %v1038 = vunpack.c.l.b16 %v884
    %v1039 = vunpack.c.h.b16 %v884
    %v1040 = vunpack.c.l.b16 %v885
    %v1041 = vunpack.c.h.b16 %v885
    %v1042 = vunpack.c.l.b16 %v886
    %v1043 = vunpack.c.h.b16 %v886
    %v1044 = vunpack.c.l.b16 %v887
    %v1045 = vunpack.c.h.b16 %v887
    %v1046 = vunpack.c.l.b16 %v888
    %v1047 = vunpack.c.h.b16 %v888
    %v1048 = vunpack.c.l.b16 %v889
    %v1049 = vunpack.c.h.b16 %v889
    %v1050 = vunpack.c.l.b16 %v890
    %v1051 = vunpack.c.h.b16 %v890
    %v1052 = vunpack.c.l.b16 %v891
    %v1053 = vunpack.c.h.b16 %v891
    %v1054 = vunpack.c.l.b16 %v892
    %v1055 = vunpack.c.h.b16 %v892
    %v1056 = vunpack.c.l.b16 %v893
    %v1057 = vunpack.c.h.b16 %v893
    %v1058 = vunpack.c.l.b16 %v894
    %v1059 = vunpack.c.h.b16 %v894
    %v1060 = vunpack.c.l.b16 %v895
    %v1061 = vunpack.c.h.b16 %v895
    %v1062 = vunpack.c.l.b16 %v896
    %v1063 = vunpack.c.h.b16 %v896
    %v1064 = vunpack.c.l.b16 %v897
    %v1065 = vunpack.c.h.b16 %v897
    %v1066 = vunpack.c.l.b16 %v898
    %v1067 = vunpack.c.h.b16 %v898
    %v1068 = vunpack.c.l.b16 %v899
    %v1069 = vunpack.c.h.b16 %v899
    %v1070 = vunpack.c.l.b16 %v900
    %v1071 = vunpack.c.h.b16 %v900
    %v1072 = vunpack.c.l.b16 %v901
    %v1073 = vunpack.c.h.b16 %v901
    %v1074 = vunpack.c.l.b16 %v902
    %v1075 = vunpack.c.h.b16 %v902
    %v1076 = vunpack.c.l.b16 %v903
    %v1077 = vunpack.c.h.b16 %v903
    %v1078 = vunpack.c.l.b16 %v904
    %v1079 = vunpack.c.h.b16 %v904
    %v1080 = vunpack.c.l.b16 %v905
    %v1081 = vunpack.c.h.b16 %v905
    %v1082 = vunpack.c.l.b16 %v906
    %v1083 = vunpack.c.h.b16 %v906
    %v1084 = vunpack.c.l.b16 %v907
    %v1085 = vunpack.c.h.b16 %v907
    %v1086 = vunpack.c.l.b16 %v908
    %v1087 = vunpack.c.h.b16 %v908
    %v1088 = vunpack.c.l.b16 %v909
    %v1089 = vunpack.c.h.b16 %v909
    %v1090 = vunpack.c.l.b16 %v910
    %v1091 = vunpack.c.h.b16 %v910
    %v1092 = vunpack.c.l.b16 %v911
    %v1093 = vunpack.c.h.b16 %v911
    %v1094 = vunpack.c.l.b16 %v912
    %v1095 = vunpack.c.h.b16 %v912
    %v1096 = vunpack.c.l.b16 %v913
    %v1097 = vunpack.c.h.b16 %v913
    %v1098 = vunpack.c.l.b16 %v914
    %v1099 = vunpack.c.h.b16 %v914
    %v1100 = vunpack.c.l.b16 %v915
    %v1101 = vunpack.c.h.b16 %v915
    %v1102 = vunpack.c.l.b16 %v916
    %v1103 = vunpack.c.h.b16 %v916
    %v1104 = vunpack.c.l.b16 %v917
    %v1105 = vunpack.c.h.b16 %v917
    %v1106 = vunpack.c.l.b16 %v918
    %v1107 = vunpack.c.h.b16 %v918
    %v1108 = vunpack.c.l.b16 %v919
    %v1109 = vunpack.c.h.b16 %v919
    %v1110 = vunpack.c.l.b16 %v920
    %v1111 = vunpack.c.h.b16 %v920
    %v1112 = vunpack.c.l.b16 %v921
    %v1113 = vunpack.c.h.b16 %v921
    %v1114 = vunpack.c.l.b16 %v922
    %v1115 = vunpack.c.h.b16 %v922
    %v1116 = vunpack.c.l.b16 %v923
    %v1117 = vunpack.c.h.b16 %v923
    %v1118 = vunpack.c.l.b16 %v924
    %v1119 = vunpack.c.h.b16 %v924
    %v1120 = vunpack.c.l.b16 %v925
    %v1121 = vunpack.c.h.b16 %v925
    %v1122 = vunpack.c.l.b16 %v926
    %v1123 = vunpack.c.h.b16 %v926
    %v1124 = vunpack.c.l.b16 %v927
    %v1125 = vunpack.c.h.b16 %v927
    %v1126 = vunpack.c.l.b16 %v928
    %v1127 = vunpack.c.h.b16 %v928
    %v1128 = vunpack.c.l.b16 %v929
    %v1129 = vunpack.c.h.b16 %v929
    %v1130 = vunpack.c.l.b16 %v930
    %v1131 = vunpack.c.h.b16 %v930
    %v1132 = vunpack.c.l.b16 %v931
    %v1133 = vunpack.c.h.b16 %v931
    %v1134 = vunpack.c.l.b16 %v932
    %v1135 = vunpack.c.h.b16 %v932
    %v1136 = vunpack.c.l.b16 %v933
    %v1137 = vunpack.c.h.b16 %v933
    %v1138 = vpack.c.b16 %v1012, %v1010
    %v1139 = vpack.c.b16 %v1013, %v1011
    %v1140 = vpack.c.b16 %v1016, %v1014
    %v1141 = vpack.c.b16 %v1017, %v1015
    %v1142 = vpack.c.b16 %v1020, %v1018
    %v1143 = vpack.c.b16 %v1021, %v1019
    %v1144 = vpack.c.b16 %v1024, %v1022
    %v1145 = vpack.c.b16 %v1025, %v1023
    %v1146 = vpack.c.b16 %v1028, %v1026
    %v1147 = vpack.c.b16 %v1029, %v1027
    %v1148 = vpack.c.b16 %v1032, %v1030
    %v1149 = vpack.c.b16 %v1033, %v1031
    %v1150 = vpack.c.b16 %v1036, %v1034
    %v1151 = vpack.c.b16 %v1037, %v1035
    %v1152 = vpack.c.b16 %v1040, %v1038
    %v1153 = vpack.c.b16 %v1041, %v1039
    %v1154 = vpack.c.b16 %v1044, %v1042
    %v1155 = vpack.c.b16 %v1045, %v1043
    %v1156 = vpack.c.b16 %v1048, %v1046
    %v1157 = vpack.c.b16 %v1049, %v1047
    %v1158 = vpack.c.b16 %v1052, %v1050
    %v1159 = vpack.c.b16 %v1053, %v1051
    %v1160 = vpack.c.b16 %v1056, %v1054
    %v1161 = vpack.c.b16 %v1057, %v1055
    %v1162 = vpack.c.b16 %v1060, %v1058
    %v1163 = vpack.c.b16 %v1061, %v1059
    %v1164 = vpack.c.b16 %v1064, %v1062
    %v1165 = vpack.c.b16 %v1065, %v1063
    %v1166 = vpack.c.b16 %v1068, %v1066
    %v1167 = vpack.c.b16 %v1069, %v1067
    %v1168 = vpack.c.b16 %v1072, %v1070
    %v1169 = vpack.c.b16 %v1073, %v1071
    %v1170 = vpack.c.b16 %v1076, %v1074
    %v1171 = vpack.c.b16 %v1077, %v1075
    %v1172 = vpack.c.b16 %v1080, %v1078
    %v1173 = vpack.c.b16 %v1081, %v1079
    %v1174 = vpack.c.b16 %v1084, %v1082
    %v1175 = vpack.c.b16 %v1085, %v1083
    %v1176 = vpack.c.b16 %v1088, %v1086
    %v1177 = vpack.c.b16 %v1089, %v1087
    %v1178 = vpack.c.b16 %v1092, %v1090
    %v1179 = vpack.c.b16 %v1093, %v1091
    %v1180 = vpack.c.b16 %v1096, %v1094
    %v1181 = vpack.c.b16 %v1097, %v1095
    %v1182 = vpack.c.b16 %v1100, %v1098
    %v1183 = vpack.c.b16 %v1101, %v1099
    %v1184 = vpack.c.b16 %v1104, %v1102
    %v1185 = vpack.c.b16 %v1105, %v1103
    %v1186 = vpack.c.b16 %v1108, %v1106
    %v1187 = vpack.c.b16 %v1109, %v1107
    %v1188 = vpack.c.b16 %v1112, %v1110
    %v1189 = vpack.c.b16 %v1113, %v1111
    %v1190 = vpack.c.b16 %v1116, %v1114
    %v1191 = vpack.c.b16 %v1117, %v1115
    %v1192 = vpack.c.b16 %v1120, %v1118
    %v1193 = vpack.c.b16 %v1121, %v1119
    %v1194 = vpack.c.b16 %v1124, %v1122
    %v1195 = vpack.c.b16 %v1125, %v1123
    %v1196 = vpack.c.b16 %v1128, %v1126
    %v1197 = vpack.c.b16 %v1129, %v1127
    %v1198 = vpack.c.b16 %v1132, %v1130
    %v1199 = vpack.c.b16 %v1133, %v1131
    %v1200 = vpack.c.b16 %v1136, %v1134
    %v1201 = vpack.c.b16 %v1137, %v1135
    %1266 = vmatprep.subr.bf16.mxu0 %v1153
    %1267 = vmatpush1.bf16.msra.mxu0 %v1152
    %1268 = vmatprep.subr.bf16.mxu0 %v1151
    %1269 = vmatpush1.bf16.msra.mxu0 %v1150
    %1270 = vmatprep.subr.bf16.mxu0 %v1149
    %1271 = vmatpush1.bf16.msra.mxu0 %v1148
    %1272 = vmatprep.subr.bf16.mxu0 %v1147
    %1273 = vmatpush1.bf16.msra.mxu0 %v1146
    %1274 = vmatprep.subr.bf16.mxu0 %v1145
    %1275 = vmatpush1.bf16.msra.mxu0 %v1144
    %1276 = vmatprep.subr.bf16.mxu0 %v1143
    %1277 = vmatpush1.bf16.msra.mxu0 %v1142
    %1278 = vmatprep.subr.bf16.mxu0 %v1141
    %1279 = vmatpush1.bf16.msra.mxu0 %v1140
    %1280 = vmatprep.subr.bf16.mxu0 %v1139
    %1281 = vmatpush1.bf16.msra.mxu0 %v1138
    %1282 = vmatprep.subr.bf16.mxu0 %v1169
    %1283 = vmatpush2.bf16.msra.mxu0 %v1168
    %1284 = vmatprep.subr.bf16.mxu0 %v1167
    %1285 = vmatpush2.bf16.msra.mxu0 %v1166
    %1286 = vmatprep.subr.bf16.mxu0 %v1165
    %1287 = vmatpush2.bf16.msra.mxu0 %v1164
    %1288 = vmatprep.subr.bf16.mxu0 %v1163
    %1289 = vmatpush2.bf16.msra.mxu0 %v1162
    %1290 = vmatprep.subr.bf16.mxu0 %v1161
    %1291 = vmatpush2.bf16.msra.mxu0 %v1160
    %1292 = vmatprep.subr.bf16.mxu0 %v1159
    %1293 = vmatpush2.bf16.msra.mxu0 %v1158
    %1294 = vmatprep.subr.bf16.mxu0 %v1157
    %1295 = vmatpush2.bf16.msra.mxu0 %v1156
    %1296 = vmatprep.subr.bf16.mxu0 %v1155
    %1297 = vmatpush2.bf16.msra.mxu0 %v1154
    %1298 = vmatprep.mubr.bf16.mxu0 %v867
    %1299 = vmatmul.mubr.bf16.gmra.mxu0 %v866
    %v1300 = vpop.f32.mrf.mxu0
    %v1301 = vadd.f32 %v939, %v1300
    %v1302 = vpop.f32.mrf.mxu0
    %v1303 = vadd.f32 %v943, %v1302
    %v1304 = vpop.f32.mrf.mxu0
    %v1305 = vadd.f32 %v939, %v1304
    %v1306 = vpop.f32.mrf.mxu0
    %v1307 = vadd.f32 %v943, %v1306
    %1308 = vdwg.mxu0
    %1309 = vmatprep.subr.bf16.mxu0 %v1185
    %1310 = vmatpush1.bf16.msra.mxu0 %v1184
    %1311 = vmatprep.subr.bf16.mxu0 %v1183
    %1312 = vmatpush1.bf16.msra.mxu0 %v1182
    %1313 = vmatprep.subr.bf16.mxu0 %v1181
    %1314 = vmatpush1.bf16.msra.mxu0 %v1180
    %1315 = vmatprep.subr.bf16.mxu0 %v1179
    %1316 = vmatpush1.bf16.msra.mxu0 %v1178
    %1317 = vmatprep.subr.bf16.mxu0 %v1177
    %1318 = vmatpush1.bf16.msra.mxu0 %v1176
    %1319 = vmatprep.subr.bf16.mxu0 %v1175
    %1320 = vmatpush1.bf16.msra.mxu0 %v1174
    %1321 = vmatprep.subr.bf16.mxu0 %v1173
    %1322 = vmatpush1.bf16.msra.mxu0 %v1172
    %1323 = vmatprep.subr.bf16.mxu0 %v1171
    %1324 = vmatpush1.bf16.msra.mxu0 %v1170
    %1325 = vmatprep.subr.bf16.mxu0 %v1201
    %1326 = vmatpush2.bf16.msra.mxu0 %v1200
    %1327 = vmatprep.subr.bf16.mxu0 %v1199
    %1328 = vmatpush2.bf16.msra.mxu0 %v1198
    %1329 = vmatprep.subr.bf16.mxu0 %v1197
    %1330 = vmatpush2.bf16.msra.mxu0 %v1196
    %1331 = vmatprep.subr.bf16.mxu0 %v1195
    %1332 = vmatpush2.bf16.msra.mxu0 %v1194
    %1333 = vmatprep.subr.bf16.mxu0 %v1193
    %1334 = vmatpush2.bf16.msra.mxu0 %v1192
    %1335 = vmatprep.subr.bf16.mxu0 %v1191
    %1336 = vmatpush2.bf16.msra.mxu0 %v1190
    %1337 = vmatprep.subr.bf16.mxu0 %v1189
    %1338 = vmatpush2.bf16.msra.mxu0 %v1188
    %1339 = vmatprep.subr.bf16.mxu0 %v1187
    %1340 = vmatpush2.bf16.msra.mxu0 %v1186
    %1341 = vmatprep.mubr.bf16.mxu0 %v869
    %1342 = vmatmul.mubr.bf16.gmra.mxu0 %v868
    %v1343 = vpop.f32.mrf.mxu0
    %v1344 = vadd.f32 %v1301, %v1343
    %v1345 = vpop.f32.mrf.mxu0
    %v1346 = vadd.f32 %v1303, %v1345
    %v1347 = vpop.f32.mrf.mxu0
    %v1348 = vadd.f32 %v1305, %v1347
    %v1349 = vpop.f32.mrf.mxu0
    %v1350 = vadd.f32 %v1307, %v1349
    %1351 = vdwg.mxu0
    %v1352 = vmax.f32 %v1344, 0.0
    %v1353 = vmax.f32 %v1346, 0.0
    %v1354 = vmax.f32 %v1348, 0.0
    %v1355 = vmax.f32 %v1350, 0.0
    %v1356 = vpack.c.bf16 %v1354, %v1352
    %v1357 = vpack.c.bf16 %v1355, %v1353
    %v1358 = vld [vmem:[#allocation6] sm:$0xf]
    %v1359 = vld [vmem:[#allocation6 + $0x4] sm:$0xf]
    %v1360 = vld [vmem:[#allocation6 + $0x8] sm:$0xf]
    %v1361 = vld [vmem:[#allocation6 + $0xc] sm:$0xf]
    %v1362 = vld [vmem:[#allocation6 + $0x10] sm:$0xf]
    %v1363 = vld [vmem:[#allocation6 + $0x14] sm:$0xf]
    %v1364 = vld [vmem:[#allocation6 + $0x18] sm:$0xf]
    %v1365 = vld [vmem:[#allocation6 + $0x1c] sm:$0xf]
    %v1366 = vld [vmem:[#allocation6 + $0x20] sm:$0xf]
    %v1367 = vld [vmem:[#allocation6 + $0x24] sm:$0xf]
    %v1368 = vld [vmem:[#allocation6 + $0x28] sm:$0xf]
    %v1369 = vld [vmem:[#allocation6 + $0x2c] sm:$0xf]
    %v1370 = vld [vmem:[#allocation6 + $0x30] sm:$0xf]
    %v1371 = vld [vmem:[#allocation6 + $0x34] sm:$0xf]
    %v1372 = vld [vmem:[#allocation6 + $0x38] sm:$0xf]
    %v1373 = vld [vmem:[#allocation6 + $0x3c] sm:$0xf]
    %v1374 = vld [vmem:[#allocation6 + $0x40] sm:$0xf]
    %v1375 = vld [vmem:[#allocation6 + $0x44] sm:$0xf]
    %v1376 = vld [vmem:[#allocation6 + $0x48] sm:$0xf]
    %v1377 = vld [vmem:[#allocation6 + $0x4c] sm:$0xf]
    %v1378 = vld [vmem:[#allocation6 + $0x50] sm:$0xf]
    %v1379 = vld [vmem:[#allocation6 + $0x54] sm:$0xf]
    %v1380 = vld [vmem:[#allocation6 + $0x58] sm:$0xf]
    %v1381 = vld [vmem:[#allocation6 + $0x5c] sm:$0xf]
    %v1382 = vld [vmem:[#allocation6 + $0x60] sm:$0xf]
    %v1383 = vld [vmem:[#allocation6 + $0x64] sm:$0xf]
    %v1384 = vld [vmem:[#allocation6 + $0x68] sm:$0xf]
    %v1385 = vld [vmem:[#allocation6 + $0x6c] sm:$0xf]
    %v1386 = vld [vmem:[#allocation6 + $0x70] sm:$0xf]
    %v1387 = vld [vmem:[#allocation6 + $0x74] sm:$0xf]
    %v1388 = vld [vmem:[#allocation6 + $0x78] sm:$0xf]
    %v1389 = vld [vmem:[#allocation6 + $0x7c] sm:$0xf]
    %v1390 = vld [vmem:[%s6] sm:$0x1]
    %v1392 = vlaneseq
    %v1393 = vshrl.u32 %v1392, 7
    %v1394 = vsub.s32 0, %v1393
    %v1395 = vrot.slane %v1390, %v1394
    %v1429 = vunpack.c.l.b16 %v1358
    %v1430 = vunpack.c.l.b16 %v1359
    %v1431 = vunpack.c.l.b16 %v1360
    %v1432 = vunpack.c.l.b16 %v1361
    %v1433 = vunpack.c.l.b16 %v1362
    %v1434 = vunpack.c.l.b16 %v1363
    %v1435 = vunpack.c.l.b16 %v1364
    %v1436 = vunpack.c.l.b16 %v1365
    %v1437 = vunpack.c.l.b16 %v1366
    %v1438 = vunpack.c.l.b16 %v1367
    %v1439 = vunpack.c.l.b16 %v1368
    %v1440 = vunpack.c.l.b16 %v1369
    %v1441 = vunpack.c.l.b16 %v1370
    %v1442 = vunpack.c.l.b16 %v1371
    %v1443 = vunpack.c.l.b16 %v1372
    %v1444 = vunpack.c.l.b16 %v1373
    %v1445 = vunpack.c.l.b16 %v1374
    %v1446 = vunpack.c.l.b16 %v1375
    %v1447 = vunpack.c.l.b16 %v1376
    %v1448 = vunpack.c.l.b16 %v1377
    %v1449 = vunpack.c.l.b16 %v1378
    %v1450 = vunpack.c.l.b16 %v1379
    %v1451 = vunpack.c.l.b16 %v1380
    %v1452 = vunpack.c.l.b16 %v1381
    %v1453 = vunpack.c.l.b16 %v1382
    %v1454 = vunpack.c.l.b16 %v1383
    %v1455 = vunpack.c.l.b16 %v1384
    %v1456 = vunpack.c.l.b16 %v1385
    %v1457 = vunpack.c.l.b16 %v1386
    %v1458 = vunpack.c.l.b16 %v1387
    %v1459 = vunpack.c.l.b16 %v1388
    %v1460 = vunpack.c.l.b16 %v1389
    %v1461 = vpack.c.b16 %v1430, %v1429
    %v1462 = vpack.c.b16 %v1432, %v1431
    %v1463 = vpack.c.b16 %v1434, %v1433
    %v1464 = vpack.c.b16 %v1436, %v1435
    %v1465 = vpack.c.b16 %v1438, %v1437
    %v1466 = vpack.c.b16 %v1440, %v1439
    %v1467 = vpack.c.b16 %v1442, %v1441
    %v1468 = vpack.c.b16 %v1444, %v1443
    %v1469 = vpack.c.b16 %v1446, %v1445
    %v1470 = vpack.c.b16 %v1448, %v1447
    %v1471 = vpack.c.b16 %v1450, %v1449
    %v1472 = vpack.c.b16 %v1452, %v1451
    %v1473 = vpack.c.b16 %v1454, %v1453
    %v1474 = vpack.c.b16 %v1456, %v1455
    %v1475 = vpack.c.b16 %v1458, %v1457
    %v1476 = vpack.c.b16 %v1460, %v1459
    %1493 = vmatprep.subr.bf16.mxu0 0
    %1494 = vmatpush1.bf16.msra.mxu0 %v1468
    %1495 = vmatprep.subr.bf16.mxu0 0
    %1496 = vmatpush1.bf16.msra.mxu0 %v1467
    %1497 = vmatprep.subr.bf16.mxu0 0
    %1498 = vmatpush1.bf16.msra.mxu0 %v1466
    %1499 = vmatprep.subr.bf16.mxu0 0
    %1500 = vmatpush1.bf16.msra.mxu0 %v1465
    %1501 = vmatprep.subr.bf16.mxu0 0
    %1502 = vmatpush1.bf16.msra.mxu0 %v1464
    %1503 = vmatprep.subr.bf16.mxu0 0
    %1504 = vmatpush1.bf16.msra.mxu0 %v1463
    %1505 = vmatprep.subr.bf16.mxu0 0
    %1506 = vmatpush1.bf16.msra.mxu0 %v1462
    %1507 = vmatprep.subr.bf16.mxu0 0
    %1508 = vmatpush1.bf16.msra.mxu0 %v1461
    %1509 = vmatprep.subr.bf16.mxu0 0
    %1510 = vmatpush2.bf16.msra.mxu0 %v1476
    %1511 = vmatprep.subr.bf16.mxu0 0
    %1512 = vmatpush2.bf16.msra.mxu0 %v1475
    %1513 = vmatprep.subr.bf16.mxu0 0
    %1514 = vmatpush2.bf16.msra.mxu0 %v1474
    %1515 = vmatprep.subr.bf16.mxu0 0
    %1516 = vmatpush2.bf16.msra.mxu0 %v1473
    %1517 = vmatprep.subr.bf16.mxu0 0
    %1518 = vmatpush2.bf16.msra.mxu0 %v1472
    %1519 = vmatprep.subr.bf16.mxu0 0
    %1520 = vmatpush2.bf16.msra.mxu0 %v1471
    %1521 = vmatprep.subr.bf16.mxu0 0
    %1522 = vmatpush2.bf16.msra.mxu0 %v1470
    %1523 = vmatprep.subr.bf16.mxu0 0
    %1524 = vmatpush2.bf16.msra.mxu0 %v1469
    %1525 = vmatprep.mubr.bf16.mxu0 %v1357
    %1526 = vmatmul.mubr.bf16.gmra.mxu0 %v1356
    %v1527 = vpop.f32.mrf.mxu0
    %v1528 = vadd.f32 %v1395, %v1527
    %v1529 = vpop.f32.mrf.mxu0
    %v1530 = vpop.f32.mrf.mxu0
    %v1531 = vadd.f32 %v1395, %v1530
    %v1532 = vpop.f32.mrf.mxu0
    %1533 = vdwg.mxu0
    %1534 = vst [vmem:[%s7] sm:$0xff] %v1528
    %1535 = vst [vmem:[%s7 + $0x8] sm:$0xff] %v1531
    // Predicated region
    $region42: #{ann_forward.1} parent=1 // pred_check
      _
    $region43: #{ann_forward.1} parent=1 // pred_check_branch
      %1537 = sbr.rel (0) target = $region45
    $region44: #{ann_forward.1} parent=1 // pred_region
      _
    $region45: #{ann_forward.1} parent=1 // pred_fallthru
      _
    // Predicated region
    $region46: #{ann_forward.1} parent=1 // pred_check
      _
    $region47: #{ann_forward.1} parent=1 // pred_check_branch
      %1539 = sbr.rel (0) target = $region49
    $region48: #{ann_forward.1} parent=1 // pred_region
      _
    $region49: #{ann_forward.1} parent=1 // pred_fallthru
      _
    %1540 = vsyncpa [#allocation3], 1
    %1541 = vsyncpa [#allocation5], 1

</llo_original>
